<compile_context>
chip_gen: v7x
topology: tpu7x:2x2x1
jax: 0.10.0
libtpu: 0.0.40
codegen_flags: <defaults>
</compile_context>

<pallas_src>
import functools
import math
from typing import NamedTuple

import jax
import jax.numpy as jnp
from jax.experimental import pallas as pl
from jax.experimental.pallas import tpu as pltpu


# ---------------------------------------------------------------------------
# Kernels
# ---------------------------------------------------------------------------
def _noisy_linear_train_kernel(x_ref, wmu_ref, wsig_ref, ein_ref, eout_ref,
                               b_ref, o_ref, *, compute_dtype):
    k = pl.program_id(1)

    # Rank-1 noise: weight_epsilon tile = eps_in[:, None] * eps_out[None, :].
    # Weights are pre-transposed to [in, out], so this feeds the MXU directly.
    w = wmu_ref[...] + wsig_ref[...] * (ein_ref[...] * eout_ref[...])   # [TK,TN]
    part = jnp.dot(x_ref[...].astype(compute_dtype),
                   w.astype(compute_dtype),
                   preferred_element_type=jnp.float32)                  # [B,TN]

    @pl.when(k == 0)
    def _():
        o_ref[...] = part + b_ref[...]          # init + bias (no scratch acc)

    @pl.when(k != 0)
    def _():
        o_ref[...] += part                      # o_ref stays resident across K


def _noisy_linear_eval_kernel(x_ref, wmu_ref, b_ref, o_ref, *, compute_dtype):
    k = pl.program_id(1)

    part = jnp.dot(x_ref[...].astype(compute_dtype),
                   wmu_ref[...].astype(compute_dtype),
                   preferred_element_type=jnp.float32)

    @pl.when(k == 0)
    def _():
        o_ref[...] = part + b_ref[...]

    @pl.when(k != 0)
    def _():
        o_ref[...] += part


# ---------------------------------------------------------------------------
# Geometry helpers
# ---------------------------------------------------------------------------
def _round_up(x, m):
    return ((x + m - 1) // m) * m


def _pad2(a, rows, cols):
    return jnp.pad(a, ((0, rows - a.shape[0]), (0, cols - a.shape[1])))


def _choose_tile(dim, preferred):
    """Pick a lane-friendly tile (multiple of 128) and the padded dim.

    The dim is padded up to a multiple of the chosen tile so awkward sizes
    (640, 896, ...) keep wide, DMA-efficient tiles, but padding overhead is
    capped at 25% so weight HBM traffic does not blow up.
    """
    d128 = _round_up(dim, 128)
    pref = max(128, (min(preferred, d128) // 128) * 128)
    tile = 128
    for t in range(pref, 127, -128):
        padded = _round_up(d128, t)
        if padded * 4 <= d128 * 5:              # padding overhead <= 25%
            tile = t
            break
    return tile, _round_up(d128, tile)


class NoisyLinearGeometry(NamedTuple):
    in_features: int
    out_features: int
    in_padded: int
    out_padded: int
    tile_k: int
    tile_n: int


# ---------------------------------------------------------------------------
# One-time layout preparation (hoisted out of the hot path).
# Call this at init / reset_noise time and reuse the result every forward.
# ---------------------------------------------------------------------------
def prepare_noisy_linear_params(weight_mu, weight_sigma, eps_in, eps_out,
                                bias_mu, bias_sigma, *,
                                tn=256, tk=512, split_n_for_megacore=True):
    """weight_* are [out, in]; eps_in is [in], eps_out is [out].

    Module semantics: weight_epsilon = outer(eps_out, eps_in),
                      bias_epsilon   = eps_out.
    Returns (params_dict_of_padded_arrays, NoisyLinearGeometry).
    """
    out_f, in_f = weight_mu.shape
    f32 = jnp.float32

    # Cap the N tile so out_p has >= 2 grid steps when possible: lets
    # dimension_semantics=("parallel", ...) shard N across both v7x TCs.
    out_d128 = _round_up(out_f, 128)
    pref_n = tn
    if split_n_for_megacore and out_d128 >= 256:
        pref_n = min(tn, out_d128 // 2)

    tile_n, out_p = _choose_tile(out_f, pref_n)
    tile_k, in_p = _choose_tile(in_f, tk)

    weight_mu = jnp.asarray(weight_mu, f32)
    weight_sigma = jnp.asarray(weight_sigma, f32)
    eps_in = jnp.asarray(eps_in, f32)
    eps_out = jnp.asarray(eps_out, f32)
    bias_mu = jnp.asarray(bias_mu, f32)
    bias_sigma = jnp.asarray(bias_sigma, f32)

    params = dict(
        # Pre-transposed to [in, out] so the kernel does a plain x @ w.
        wmu_t=_pad2(weight_mu.T, in_p, out_p),
        wsig_t=_pad2(weight_sigma.T, in_p, out_p),
        # Rank-1 noise factors (tiny vectors instead of a full matrix).
        eps_in_col=_pad2(eps_in.reshape(in_f, 1), in_p, 1),
        eps_out_row=_pad2(eps_out.reshape(1, out_f), 1, out_p),
        # Bias noise combine is O(out): done once here.
        bias_train=_pad2((bias_mu + bias_sigma * eps_out).reshape(1, out_f),
                         1, out_p),
        bias_eval=_pad2(bias_mu.reshape(1, out_f), 1, out_p),
    )
    geom = NoisyLinearGeometry(in_features=in_f, out_features=out_f,
                               in_padded=in_p, out_padded=out_p,
                               tile_k=tile_k, tile_n=tile_n)
    return params, geom


# ---------------------------------------------------------------------------
# Hot-path forward
# ---------------------------------------------------------------------------
def noisy_linear_forward_prepared(x, params, geom, *, training=True,
                                  compute_dtype=jnp.float32,
                                  vmem_limit_bytes=None):
    B, in_f = x.shape
    assert in_f == geom.in_features

    TK, TN = geom.tile_k, geom.tile_n
    in_p, out_p = geom.in_padded, geom.out_padded

    B_p = _round_up(max(B, 8), 8)
    x_p = jnp.pad(x.astype(jnp.float32),
                  ((0, B_p - B), (0, in_p - in_f)))

    grid = (out_p // TN, in_p // TK)            # reduction (K) axis last

    if vmem_limit_bytes is None:
        streams = 2 if training else 1
        per_buf = (B_p * TK + streams * TK * TN + TK + 2 * TN) * 4
        est = 2 * per_buf + 2 * B_p * TN * 4    # double-buffered ins + output
        vmem_limit_bytes = int(min(64 * 1024 * 1024,
                                   max(32 * 1024 * 1024, 2 * est)))

    compiler_params = pltpu.CompilerParams(
        dimension_semantics=("parallel", "arbitrary"),
        vmem_limit_bytes=vmem_limit_bytes,
    )

    x_spec = pl.BlockSpec((B_p, TK), lambda n, k: (0, k))
    w_spec = pl.BlockSpec((TK, TN), lambda n, k: (k, n))
    ein_spec = pl.BlockSpec((TK, 1), lambda n, k: (k, 0))
    eout_spec = pl.BlockSpec((1, TN), lambda n, k: (0, n))
    b_spec = pl.BlockSpec((1, TN), lambda n, k: (0, n))
    o_spec = pl.BlockSpec((B_p, TN), lambda n, k: (0, n))
    out_shape = jax.ShapeDtypeStruct((B_p, out_p), jnp.float32)

    if training:
        kernel = functools.partial(_noisy_linear_train_kernel,
                                   compute_dtype=compute_dtype)
        out_padded = pl.pallas_call(
            kernel,
            out_shape=out_shape,
            grid_spec=pltpu.PrefetchScalarGridSpec(
                num_scalar_prefetch=0,
                grid=grid,
                in_specs=[x_spec, w_spec, w_spec, ein_spec, eout_spec, b_spec],
                out_specs=o_spec,
            ),
            compiler_params=compiler_params,
        )(x_p, params["wmu_t"], params["wsig_t"],
          params["eps_in_col"], params["eps_out_row"], params["bias_train"])
    else:
        # Eval path: mu-only kernel, sigma / eps are never DMA'd.
        kernel = functools.partial(_noisy_linear_eval_kernel,
                                   compute_dtype=compute_dtype)
        out_padded = pl.pallas_call(
            kernel,
            out_shape=out_shape,
            grid_spec=pltpu.PrefetchScalarGridSpec(
                num_scalar_prefetch=0,
                grid=grid,
                in_specs=[x_spec, w_spec, b_spec],
                out_specs=o_spec,
            ),
            compiler_params=compiler_params,
        )(x_p, params["wmu_t"], params["bias_eval"])

    return out_padded[:B, :geom.out_features]


def noisy_linear_forward(x, weight_mu, weight_sigma, eps_in, eps_out,
                         bias_mu, bias_sigma, *, training=True,
                         tn=256, tk=512, compute_dtype=jnp.float32):
    """Convenience one-shot wrapper (prepares layout then runs the kernel).

    For repeated forwards, call prepare_noisy_linear_params() once and reuse
    it via noisy_linear_forward_prepared() so the transpose/pad is hoisted.
    """
    params, geom = prepare_noisy_linear_params(
        weight_mu, weight_sigma, eps_in, eps_out, bias_mu, bias_sigma,
        tn=tn, tk=tk)
    return noisy_linear_forward_prepared(x, params, geom, training=training,
                                         compute_dtype=compute_dtype)


# ---------------------------------------------------------------------------
# Deterministic parameter / noise construction (mirrors __init__,
# reset_parameters, reset_noise of the PyTorch module).
# ---------------------------------------------------------------------------
def init_noisy_linear_params(key, in_features, out_features, std_init=0.4):
    k_wmu, k_bmu, k_ein, k_eout = jax.random.split(key, 4)
    mu_range = 1.0 / math.sqrt(in_features)

    weight_mu = jax.random.uniform(
        k_wmu, (out_features, in_features), jnp.float32, -mu_range, mu_range)
    weight_sigma = jnp.full((out_features, in_features),
                            std_init / math.sqrt(in_features), jnp.float32)
    bias_mu = jax.random.uniform(
        k_bmu, (out_features,), jnp.float32, -mu_range, mu_range)
    bias_sigma = jnp.full((out_features,),
                          std_init / math.sqrt(out_features), jnp.float32)

    def scale_noise(k, size):
        z = jax.random.normal(k, (size,), jnp.float32)
        return jnp.sign(z) * jnp.sqrt(jnp.abs(z))

    eps_in = scale_noise(k_ein, in_features)
    eps_out = scale_noise(k_eout, out_features)
    weight_epsilon = jnp.outer(eps_out, eps_in)   # epsilon_out.ger(epsilon_in)

    return dict(weight_mu=weight_mu, weight_sigma=weight_sigma,
                eps_in=eps_in, eps_out=eps_out,
                weight_epsilon=weight_epsilon, bias_epsilon=eps_out,
                bias_mu=bias_mu, bias_sigma=bias_sigma)


if __name__ == "__main__":
    # Small shapes; tiles forced to 128 so the test exercises the multi-step
    # K accumulation and the 2-way N grid (default tiles collapse it to 1-2
    # steps for layers this small).
    B, in_features, out_features = 8, 300, 200

    key = jax.random.PRNGKey(0)
    k_x, k_p = jax.random.split(key)
    params = init_noisy_linear_params(k_p, in_features, out_features,
                                      std_init=0.4)
    x = jax.random.normal(k_x, (B, in_features), jnp.float32)

    # One-time layout prep (the hoisted transpose/pad).
    prep, geom = prepare_noisy_linear_params(
        params["weight_mu"], params["weight_sigma"],
        params["eps_in"], params["eps_out"],
        params["bias_mu"], params["bias_sigma"],
        tn=128, tk=128)

    fwd_train = jax.jit(functools.partial(
        noisy_linear_forward_prepared, geom=geom, training=True))
    fwd_eval = jax.jit(functools.partial(
        noisy_linear_forward_prepared, geom=geom, training=False))

    # Training-mode forward through the Pallas kernel.
    out = jax.block_until_ready(fwd_train(x, prep))

    # Pure-JAX reference (training semantics, full epsilon matrix).
    w_eff = params["weight_mu"] + params["weight_sigma"] * params["weight_epsilon"]
    b_eff = params["bias_mu"] + params["bias_sigma"] * params["bias_epsilon"]
    ref = x @ w_eff.T + b_eff
    assert out.shape == (B, out_features)
    assert jnp.allclose(out, ref, atol=1e-4, rtol=1e-4), \
        float(jnp.max(jnp.abs(out - ref)))

    # Eval-mode forward (mu-only kernel).
    out_eval = jax.block_until_ready(fwd_eval(x, prep))
    ref_eval = x @ params["weight_mu"].T + params["bias_mu"]
    assert jnp.allclose(out_eval, ref_eval, atol=1e-4, rtol=1e-4)

    # Convenience one-shot wrapper with default (large) tiles.
    out2 = jax.block_until_ready(noisy_linear_forward(
        x, params["weight_mu"], params["weight_sigma"],
        params["eps_in"], params["eps_out"],
        params["bias_mu"], params["bias_sigma"], training=True))
    assert jnp.allclose(out2, ref, atol=1e-4, rtol=1e-4)

    print("KERNEL_OK")
</pallas_src>

<mosaic_0001>
module attributes {stable_mosaic.version = 11 : i64} {
  func.func @_noisy_linear_train_kernel(%arg0: i32, %arg1: i32, %arg2: memref<8x128xf32, #tpu.memory_space<vmem>>, %arg3: memref<128x128xf32, #tpu.memory_space<vmem>>, %arg4: memref<128x128xf32, #tpu.memory_space<vmem>>, %arg5: memref<128x1xf32, #tpu.memory_space<vmem>>, %arg6: memref<1x128xf32, #tpu.memory_space<vmem>>, %arg7: memref<1x128xf32, #tpu.memory_space<vmem>>, %arg8: memref<8x128xf32, #tpu.memory_space<vmem>>) attributes {dimension_semantics = [#tpu.dimension_semantics<parallel>, #tpu.dimension_semantics<arbitrary>], iteration_bounds = array<i64: 2, 3>, scalar_prefetch = 0 : i64, scratch_operands = 0 : i64, tpu.core_type = #tpu.core_type<tc>, window_params = [{transform_indices = @transform_0, window_bounds = array<i64: 8, 128>}, {transform_indices = @transform_1, window_bounds = array<i64: 128, 128>}, {transform_indices = @transform_2, window_bounds = array<i64: 128, 128>}, {transform_indices = @transform_3, window_bounds = array<i64: 128, 1>}, {transform_indices = @transform_4, window_bounds = array<i64: 1, 128>}, {transform_indices = @transform_5, window_bounds = array<i64: 1, 128>}, {transform_indices = @transform_6, window_bounds = array<i64: 8, 128>}]} {
    %c0 = arith.constant 0 : index
    %c0_0 = arith.constant 0 : index
    %0 = vector.load %arg3[%c0, %c0_0] : memref<128x128xf32, #tpu.memory_space<vmem>>, vector<128x128xf32>
    %c0_1 = arith.constant 0 : index
    %c0_2 = arith.constant 0 : index
    %1 = vector.load %arg4[%c0_1, %c0_2] : memref<128x128xf32, #tpu.memory_space<vmem>>, vector<128x128xf32>
    %c0_3 = arith.constant 0 : index
    %c0_4 = arith.constant 0 : index
    %2 = vector.load %arg5[%c0_3, %c0_4] : memref<128x1xf32, #tpu.memory_space<vmem>>, vector<128x1xf32>
    %c0_5 = arith.constant 0 : index
    %c0_6 = arith.constant 0 : index
    %3 = vector.load %arg6[%c0_5, %c0_6] : memref<1x128xf32, #tpu.memory_space<vmem>>, vector<1x128xf32>
    %4 = vector.broadcast %2 : vector<128x1xf32> to vector<128x128xf32>
    %5 = vector.broadcast %3 : vector<1x128xf32> to vector<128x128xf32>
    %6 = arith.mulf %4, %5 : vector<128x128xf32>
    %7 = arith.mulf %1, %6 : vector<128x128xf32>
    %8 = arith.addf %0, %7 : vector<128x128xf32>
    %c0_7 = arith.constant 0 : index
    %c0_8 = arith.constant 0 : index
    %9 = vector.load %arg2[%c0_7, %c0_8] : memref<8x128xf32, #tpu.memory_space<vmem>>, vector<8x128xf32>
    %cst = arith.constant dense<0.000000e+00> : vector<8x128xf32>
    %10 = tpu.matmul %9, %8, %cst {dimension_numbers = #tpu.dot_dimension_numbers<[1], [0], [0], [1], [0, 0, 1, 1], [], []>} : vector<8x128xf32>, vector<128x128xf32>, vector<8x128xf32> -> vector<8x128xf32>
    %c0_i32 = arith.constant 0 : i32
    %11 = arith.cmpi eq, %arg1, %c0_i32 : i32
    %12 = arith.extui %11 : i1 to i32
    %c0_i32_9 = arith.constant 0 : i32
    %13 = arith.cmpi ne, %12, %c0_i32_9 : i32
    scf.if %13 {
      %c0_12 = arith.constant 0 : index
      %c0_13 = arith.constant 0 : index
      %17 = vector.load %arg7[%c0_12, %c0_13] : memref<1x128xf32, #tpu.memory_space<vmem>>, vector<1x128xf32>
      %18 = vector.broadcast %17 : vector<1x128xf32> to vector<8x128xf32>
      %19 = arith.addf %10, %18 : vector<8x128xf32>
      %c0_14 = arith.constant 0 : index
      %c0_15 = arith.constant 0 : index
      %20 = vector.load %arg8[%c0_14, %c0_15] : memref<8x128xf32, #tpu.memory_space<vmem>>, vector<8x128xf32>
      tpu.vector_store %arg8[%c0_14, %c0_15], %19 {strides = array<i32>} : memref<8x128xf32, #tpu.memory_space<vmem>>, vector<8x128xf32>,
    } else {
    }
    %c0_i32_10 = arith.constant 0 : i32
    %14 = arith.cmpi ne, %arg1, %c0_i32_10 : i32
    %15 = arith.extui %14 : i1 to i32
    %c0_i32_11 = arith.constant 0 : i32
    %16 = arith.cmpi ne, %15, %c0_i32_11 : i32
    scf.if %16 {
      %c0_12 = arith.constant 0 : index
      %c0_13 = arith.constant 0 : index
      %17 = vector.load %arg8[%c0_12, %c0_13] : memref<8x128xf32, #tpu.memory_space<vmem>>, vector<8x128xf32>
      %18 = arith.addf %17, %10 : vector<8x128xf32>
      %c0_14 = arith.constant 0 : index
      %c0_15 = arith.constant 0 : index
      %19 = vector.load %arg8[%c0_14, %c0_15] : memref<8x128xf32, #tpu.memory_space<vmem>>, vector<8x128xf32>
      tpu.vector_store %arg8[%c0_14, %c0_15], %18 {strides = array<i32>} : memref<8x128xf32, #tpu.memory_space<vmem>>, vector<8x128xf32>,
    } else {
    }
    return
  }
  func.func @transform_0(%arg0: i32, %arg1: i32) -> (i32, i32) {
    %c0_i32 = arith.constant 0 : i32
    %c0_i32_0 = arith.constant 0 : i32
    return %c0_i32, %arg1 : i32, i32
  }
  func.func @transform_1(%arg0: i32, %arg1: i32) -> (i32, i32) {
    %c0_i32 = arith.constant 0 : i32
    return %arg1, %arg0 : i32, i32
  }
  func.func @transform_2(%arg0: i32, %arg1: i32) -> (i32, i32) {
    %c0_i32 = arith.constant 0 : i32
    return %arg1, %arg0 : i32, i32
  }
  func.func @transform_3(%arg0: i32, %arg1: i32) -> (i32, i32) {
    %c0_i32 = arith.constant 0 : i32
    %c0_i32_0 = arith.constant 0 : i32
    return %arg1, %c0_i32 : i32, i32
  }
  func.func @transform_4(%arg0: i32, %arg1: i32) -> (i32, i32) {
    %c0_i32 = arith.constant 0 : i32
    %c0_i32_0 = arith.constant 0 : i32
    return %c0_i32, %arg0 : i32, i32
  }
  func.func @transform_5(%arg0: i32, %arg1: i32) -> (i32, i32) {
    %c0_i32 = arith.constant 0 : i32
    %c0_i32_0 = arith.constant 0 : i32
    return %c0_i32, %arg0 : i32, i32
  }
  func.func @transform_6(%arg0: i32, %arg1: i32) -> (i32, i32) {
    %c0_i32 = arith.constant 0 : i32
    %c0_i32_0 = arith.constant 0 : i32
    return %c0_i32, %arg0 : i32, i32
  }
}

</mosaic_0001>

<llo_original>
// kernel: noisy_linear_forward_prepared.1
$region0: #{noisy_linear_forward_prepared.1}
  #allocation0 [shape = 'u32[]', space=smem, size = 0x4, offset = 0x4, fixed_abs, tag = 'smem constant byte address 0x4 - core index']
  #allocation1 [shape = 'u32[144,128]{1,0:T(1,128)}', space=vmem, size = 0x12000, scoped, tag = 'internal scratch']
  %s0 = inlined_call_operand.vmem [shape: f32[8,384], index: 0, kind: input, shape index: {}]
  %s1 = inlined_call_operand.hbm [shape: f32[384,256], index: 1, kind: input, shape index: {}]
  %s2 = inlined_call_operand.hbm [shape: f32[384,256], index: 2, kind: input, shape index: {}]
  %s3 = inlined_call_operand.vmem [shape: f32[384,1], index: 3, kind: input, shape index: {}]
  %s4 = inlined_call_operand.vmem [shape: f32[1,256], index: 4, kind: input, shape index: {}]
  %s5 = inlined_call_operand.vmem [shape: f32[1,256], index: 5, kind: input, shape index: {}]
  %s6 = inlined_call_operand.hbm [shape: f32[8,256], index: 6, kind: output, shape index: {}]
  %s7 = sld [smem:[#allocation0]]
  $region73: #{noisy_linear_forward_prepared.1} parent=0
    _
  %s9 = ssub.s32 1, %s7
  %s10 = scalar_select 0, %s9, %s7
  $region1: #{noisy_linear_forward_prepared.1} parent=0
    #allocation2 [shape = 'u8[131072]{0}', space=vmem, size = 0x20000, scoped, tag = 'input window, operand 1']
    #allocation3 [shape = 's32[2]{0}', space=sflag, size = 0x8, scoped, tag = 'scoped memory for noisy_linear_forward_prepared.1']
    #allocation4 [shape = 's32[2]{0}', space=sflag, size = 0x8, scoped, tag = 'scoped memory for noisy_linear_forward_prepared.1']
    #allocation5 [shape = 'u8[131072]{0}', space=vmem, size = 0x20000, scoped, tag = 'input window, operand 2']
    #allocation6 [shape = 's32[2]{0}', space=sflag, size = 0x8, scoped, tag = 'scoped memory for noisy_linear_forward_prepared.1']
    #allocation7 [shape = 'u8[8192]{0}', space=vmem, size = 0x2000, scoped, tag = 'output window, operand 0']
    %11 = vsyncpa [#allocation3], 0
    %s12 = scalar_lea.sflag [#allocation3], 1
    %13 = vsyncpa %s12, 0
    %14 = vsyncpa [#allocation6], 0
    %s15 = scalar_lea.sflag [#allocation6], 1
    %16 = vsyncpa %s15, 0
    %17 = vsyncpa [#allocation4], 0
    %s18 = scalar_lea.sflag [#allocation4], 1
    %19 = vsyncpa %s18, 0
    loop: start=0, step=1, limit=8
    $region2: #{noisy_linear_forward_prepared.1} parent=1 // loop_pre_header
      _
    $region3: #{noisy_linear_forward_prepared.1} parent=1 // loop_header
      %s21 = sphi 0, %s25
      %p22 = scmp.ge.s32.totalorder %s21, 8
      %s28 = sphi 0, %s40
      %s29 = sphi 0, %s36
      %s30 = sphi 0, %s28
      %s31 = sphi 0, %s29
      %s32 = sphi 0, %s30
      %s33 = sphi 0, %s31
      %s43 = sphi 0, %s45
      %s46 = sphi 0, %s43
      %s47 = sphi 0, %s46
      %s63 = sphi 0, %s47
      %s71 = sphi 0, %s73
      %s74 = sphi 0, %s71
      %s75 = sphi 0, %s74
      %s91 = sphi 0, %s75
      %s99 = sphi 0, %s101
      %s102 = sphi 0, %s99
      %s103 = sphi 0, %s102
      %s119 = sphi 0, %s103
      %s125 = sphi 0, %s127
      %s128 = sphi 0, %s125
      %s129 = sphi 0, %s128
      %s145 = sphi 0, %s129
      %s151 = sphi 0, %s153
      %s154 = sphi 0, %s151
      %s155 = sphi 0, %s154
      %s171 = sphi 0, %s155
      %s177 = sphi 0, %s179
      %s180 = sphi 0, %s177
      %s181 = sphi 0, %s180
      %s197 = sphi 0, %s181
      %s203 = sphi 0, %s205
      %s206 = sphi 0, %s203
      %s207 = sphi 0, %s206
      %s223 = sphi 0, %s207
    $region4: #{noisy_linear_forward_prepared.1} parent=1 // loop_header_branch
      %24 = sbr.rel (%p22) target = $region8
    $region5: #{noisy_linear_forward_prepared.1} parent=1 // loop_body
      %s26 = ssub.s32 %s21, 1
      %s27 = ssub.s32 %s21, 2
      %s34 = sadd.s32 1, %s29
      %p35 = scmp.ge.s32.totalorder %s34, 3
      %s36 = scalar_select %p35, 0, %s34
      %s37 = sadd.s32 1, %s28
      %s38 = scalar_select %p35, %s37, %s28
      %p39 = scmp.ge.s32.totalorder %s38, 2
      %s40 = scalar_select %p39, 0, %s38
      %s41 = ssub.s32 %s29, %s36
      %p42 = scmp.eq.s32.totalorder %s41, 0
      %s44 = sadd.s32 %s43, 1
      %s45 = scalar_select %p42, %s43, %s44
      %p48 = pneg %p42
      %p49 = scmp.eq.s32.totalorder %s21, 5
      %p50 = por %p48, %p49
      %p51 = scmp.ne.s32.totalorder %s43, %s46
      %p52 = scmp.eq.s32.totalorder %s21, 0
      %p53 = por %p51, %p52
      %p54 = scmp.ne.s32.totalorder %s43, %s46
      %p55 = scmp.eq.s32.totalorder %s26, 5
      %p56 = por %p54, %p55
      %p57 = scmp.ne.s32.totalorder %s46, %s47
      %p58 = scmp.eq.s32.totalorder %s26, 0
      %p59 = por %p57, %p58
      %p60 = scmp.ne.s32.totalorder %s46, %s47
      %p61 = scmp.eq.s32.totalorder %s27, 5
      %p62 = por %p60, %p61
      %p64 = scmp.ne.s32.totalorder %s47, %s63
      %p65 = scmp.eq.s32.totalorder %s27, 0
      %p66 = por %p64, %p65
      %s67 = ssub.s32 %s29, %s36
      %s68 = ssub.s32 %s28, %s40
      %s69 = sor.u32 %s67, %s68
      %p70 = scmp.eq.s32.totalorder %s69, 0
      %s72 = sadd.s32 %s71, 1
      %s73 = scalar_select %p70, %s71, %s72
      %p76 = pneg %p70
      %p77 = scmp.eq.s32.totalorder %s21, 5
      %p78 = por %p76, %p77
      %p79 = scmp.ne.s32.totalorder %s71, %s74
      %p80 = scmp.eq.s32.totalorder %s21, 0
      %p81 = por %p79, %p80
      %p82 = scmp.ne.s32.totalorder %s71, %s74
      %p83 = scmp.eq.s32.totalorder %s26, 5
      %p84 = por %p82, %p83
      %p85 = scmp.ne.s32.totalorder %s74, %s75
      %p86 = scmp.eq.s32.totalorder %s26, 0
      %p87 = por %p85, %p86
      %p88 = scmp.ne.s32.totalorder %s74, %s75
      %p89 = scmp.eq.s32.totalorder %s27, 5
      %p90 = por %p88, %p89
      %p92 = scmp.ne.s32.totalorder %s75, %s91
      %p93 = scmp.eq.s32.totalorder %s27, 0
      %p94 = por %p92, %p93
      %s95 = ssub.s32 %s29, %s36
      %s96 = ssub.s32 %s28, %s40
      %s97 = sor.u32 %s95, %s96
      %p98 = scmp.eq.s32.totalorder %s97, 0
      %s100 = sadd.s32 %s99, 1
      %s101 = scalar_select %p98, %s99, %s100
      %p104 = pneg %p98
      %p105 = scmp.eq.s32.totalorder %s21, 5
      %p106 = por %p104, %p105
      %p107 = scmp.ne.s32.totalorder %s99, %s102
      %p108 = scmp.eq.s32.totalorder %s21, 0
      %p109 = por %p107, %p108
      %p110 = scmp.ne.s32.totalorder %s99, %s102
      %p111 = scmp.eq.s32.totalorder %s26, 5
      %p112 = por %p110, %p111
      %p113 = scmp.ne.s32.totalorder %s102, %s103
      %p114 = scmp.eq.s32.totalorder %s26, 0
      %p115 = por %p113, %p114
      %p116 = scmp.ne.s32.totalorder %s102, %s103
      %p117 = scmp.eq.s32.totalorder %s27, 5
      %p118 = por %p116, %p117
      %p120 = scmp.ne.s32.totalorder %s103, %s119
      %p121 = scmp.eq.s32.totalorder %s27, 0
      %p122 = por %p120, %p121
      %s123 = ssub.s32 %s29, %s36
      %p124 = scmp.eq.s32.totalorder %s123, 0
      %s126 = sadd.s32 %s125, 1
      %s127 = scalar_select %p124, %s125, %s126
      %p130 = pneg %p124
      %p131 = scmp.eq.s32.totalorder %s21, 5
      %p132 = por %p130, %p131
      %p133 = scmp.ne.s32.totalorder %s125, %s128
      %p134 = scmp.eq.s32.totalorder %s21, 0
      %p135 = por %p133, %p134
      %p136 = scmp.ne.s32.totalorder %s125, %s128
      %p137 = scmp.eq.s32.totalorder %s26, 5
      %p138 = por %p136, %p137
      %p139 = scmp.ne.s32.totalorder %s128, %s129
      %p140 = scmp.eq.s32.totalorder %s26, 0
      %p141 = por %p139, %p140
      %p142 = scmp.ne.s32.totalorder %s128, %s129
      %p143 = scmp.eq.s32.totalorder %s27, 5
      %p144 = por %p142, %p143
      %p146 = scmp.ne.s32.totalorder %s129, %s145
      %p147 = scmp.eq.s32.totalorder %s27, 0
      %p148 = por %p146, %p147
      %s149 = ssub.s32 %s28, %s40
      %p150 = scmp.eq.s32.totalorder %s149, 0
      %s152 = sadd.s32 %s151, 1
      %s153 = scalar_select %p150, %s151, %s152
      %p156 = pneg %p150
      %p157 = scmp.eq.s32.totalorder %s21, 5
      %p158 = por %p156, %p157
      %p159 = scmp.ne.s32.totalorder %s151, %s154
      %p160 = scmp.eq.s32.totalorder %s21, 0
      %p161 = por %p159, %p160
      %p162 = scmp.ne.s32.totalorder %s151, %s154
      %p163 = scmp.eq.s32.totalorder %s26, 5
      %p164 = por %p162, %p163
      %p165 = scmp.ne.s32.totalorder %s154, %s155
      %p166 = scmp.eq.s32.totalorder %s26, 0
      %p167 = por %p165, %p166
      %p168 = scmp.ne.s32.totalorder %s154, %s155
      %p169 = scmp.eq.s32.totalorder %s27, 5
      %p170 = por %p168, %p169
      %p172 = scmp.ne.s32.totalorder %s155, %s171
      %p173 = scmp.eq.s32.totalorder %s27, 0
      %p174 = por %p172, %p173
      %s175 = ssub.s32 %s28, %s40
      %p176 = scmp.eq.s32.totalorder %s175, 0
      %s178 = sadd.s32 %s177, 1
      %s179 = scalar_select %p176, %s177, %s178
      %p182 = pneg %p176
      %p183 = scmp.eq.s32.totalorder %s21, 5
      %p184 = por %p182, %p183
      %p185 = scmp.ne.s32.totalorder %s177, %s180
      %p186 = scmp.eq.s32.totalorder %s21, 0
      %p187 = por %p185, %p186
      %p188 = scmp.ne.s32.totalorder %s177, %s180
      %p189 = scmp.eq.s32.totalorder %s26, 5
      %p190 = por %p188, %p189
      %p191 = scmp.ne.s32.totalorder %s180, %s181
      %p192 = scmp.eq.s32.totalorder %s26, 0
      %p193 = por %p191, %p192
      %p194 = scmp.ne.s32.totalorder %s180, %s181
      %p195 = scmp.eq.s32.totalorder %s27, 5
      %p196 = por %p194, %p195
      %p198 = scmp.ne.s32.totalorder %s181, %s197
      %p199 = scmp.eq.s32.totalorder %s27, 0
      %p200 = por %p198, %p199
      %s201 = ssub.s32 %s28, %s40
      %p202 = scmp.eq.s32.totalorder %s201, 0
      %s204 = sadd.s32 %s203, 1
      %s205 = scalar_select %p202, %s203, %s204
      %p208 = pneg %p202
      %p209 = scmp.eq.s32.totalorder %s21, 5
      %p210 = por %p208, %p209
      %p211 = scmp.ne.s32.totalorder %s203, %s206
      %p212 = scmp.eq.s32.totalorder %s21, 0
      %p213 = por %p211, %p212
      %p214 = scmp.ne.s32.totalorder %s203, %s206
      %p215 = scmp.eq.s32.totalorder %s26, 5
      %p216 = por %p214, %p215
      %p217 = scmp.ne.s32.totalorder %s206, %s207
      %p218 = scmp.eq.s32.totalorder %s26, 0
      %p219 = por %p217, %p218
      %p220 = scmp.ne.s32.totalorder %s206, %s207
      %p221 = scmp.eq.s32.totalorder %s27, 5
      %p222 = por %p220, %p221
      %p224 = scmp.ne.s32.totalorder %s207, %s223
      %p225 = scmp.eq.s32.totalorder %s27, 0
      %p226 = por %p224, %p225
      %p227 = scmp.le.s32.totalorder 1, %s21
      %p228 = scmp.lt.s32.totalorder %s21, 7
      %p229 = pnand %p227, %p228
      %p230 = pneg %p229
      // Predicated region
      $region9: #{noisy_linear_forward_prepared.1} parent=5 // pred_check
        _
      $region10: #{noisy_linear_forward_prepared.1} parent=5 // pred_check_branch
        %232 = sbr.rel (%p229) target = $region12
      $region11: #{noisy_linear_forward_prepared.1} parent=5 // pred_region
        %s233 = ssub.s32 %s21, 1
      $region12: #{noisy_linear_forward_prepared.1} parent=5 // pred_fallthru
        _
      %p234 = scmp.lt.s32.totalorder %s21, 6
      // Predicated region
      $region13: #{noisy_linear_forward_prepared.1} parent=5 // pred_check
        %p235 = pneg %p234
      $region14: #{noisy_linear_forward_prepared.1} parent=5 // pred_check_branch
        %237 = sbr.rel (%p235) target = $region16
      $region15: #{noisy_linear_forward_prepared.1} parent=5 // pred_region
        // Predicated region
        $region17: #{noisy_linear_forward_prepared.1} parent=15 // pred_check
          %p238 = pneg %p53
        $region18: #{noisy_linear_forward_prepared.1} parent=15 // pred_check_branch
          %240 = sbr.rel (%p238) target = $region20
        $region19: #{noisy_linear_forward_prepared.1} parent=15 // pred_region
          %p241 = scmp.lt.s32.totalorder %s29, 2
          %s242 = scalar_select %p241, %s29, 2
          %s243 = smul.addr %s242, 8
          %s244 = scalar_lea.vmem %s0, %s243
        $region20: #{noisy_linear_forward_prepared.1} parent=15 // pred_fallthru
          _
        // Predicated region
        $region21: #{noisy_linear_forward_prepared.1} parent=15 // pred_check
          %p245 = pneg %p81
        $region22: #{noisy_linear_forward_prepared.1} parent=15 // pred_check_branch
          %247 = sbr.rel (%p245) target = $region24
        $region23: #{noisy_linear_forward_prepared.1} parent=15 // pred_region
          %s248 = sand.u32 %s71, 1
          %s249 = scalar_lea.sflag [#allocation3], %s248
          %s250 = sand.u32 %s71, 1
          %s251 = smul.addr %s250, 128
          %s252 = scalar_lea.vmem [#allocation2], %s251
          %s253 = smul.u32 16, %s29
          %s255 = ssub.s32 2048, 2048
          %256 = vsyncadd %s249, %s255
          %s257 = smul.addr %s253, 2
          %s258 = sadd.s32 %s28, %s257
          %s259 = smul.addr %s258, 128
          %s260 = scalar_lea.hbm %s1, %s259
          %s261 = sshll.u32 %s252, 4
          %s262 = int_to_ptr.vmem [resolvable:$true] %s261
          %267 = dma.hbm_to_vmem [thread:$0]  %s260, 2048, %s262, %s249, 256, 128, 8
        $region24: #{noisy_linear_forward_prepared.1} parent=15 // pred_fallthru
          _
        // Predicated region
        $region25: #{noisy_linear_forward_prepared.1} parent=15 // pred_check
          %p268 = pneg %p109
        $region26: #{noisy_linear_forward_prepared.1} parent=15 // pred_check_branch
          %270 = sbr.rel (%p268) target = $region28
        $region27: #{noisy_linear_forward_prepared.1} parent=15 // pred_region
          %s271 = sand.u32 %s99, 1
          %s272 = scalar_lea.sflag [#allocation6], %s271
          %s273 = sand.u32 %s99, 1
          %s274 = smul.addr %s273, 128
          %s275 = scalar_lea.vmem [#allocation5], %s274
          %s276 = smul.u32 16, %s29
          %s278 = ssub.s32 2048, 2048
          %279 = vsyncadd %s272, %s278
          %s280 = smul.addr %s276, 2
          %s281 = sadd.s32 %s28, %s280
          %s282 = smul.addr %s281, 128
          %s283 = scalar_lea.hbm %s2, %s282
          %s284 = sshll.u32 %s275, 4
          %s285 = int_to_ptr.vmem [resolvable:$true] %s284
          %290 = dma.hbm_to_vmem [thread:$0]  %s283, 2048, %s285, %s272, 256, 128, 8
        $region28: #{noisy_linear_forward_prepared.1} parent=15 // pred_fallthru
          _
        // Predicated region
        $region29: #{noisy_linear_forward_prepared.1} parent=15 // pred_check
          %p291 = pneg %p135
        $region30: #{noisy_linear_forward_prepared.1} parent=15 // pred_check_branch
          %293 = sbr.rel (%p291) target = $region32
        $region31: #{noisy_linear_forward_prepared.1} parent=15 // pred_region
          %s294 = smul.u32 16, %s29
          %p295 = scmp.lt.s32.totalorder %s294, 47
          %s296 = scalar_select %p295, %s294, 47
          %s297 = smul.addr %s296, 8
          %s298 = scalar_lea.vmem %s3, %s297
          %s299 = smul.u32 16, %s29
        $region32: #{noisy_linear_forward_prepared.1} parent=15 // pred_fallthru
          _
        // Predicated region
        $region33: #{noisy_linear_forward_prepared.1} parent=15 // pred_check
          %p300 = pneg %p161
        $region34: #{noisy_linear_forward_prepared.1} parent=15 // pred_check_branch
          %302 = sbr.rel (%p300) target = $region36
        $region35: #{noisy_linear_forward_prepared.1} parent=15 // pred_region
          %p303 = scmp.lt.s32.totalorder %s28, 1
          %s304 = scalar_select %p303, %s28, 1
          %s305 = scalar_lea.vmem %s4, %s304
        $region36: #{noisy_linear_forward_prepared.1} parent=15 // pred_fallthru
          _
        // Predicated region
        $region37: #{noisy_linear_forward_prepared.1} parent=15 // pred_check
          %p306 = pneg %p187
        $region38: #{noisy_linear_forward_prepared.1} parent=15 // pred_check_branch
          %308 = sbr.rel (%p306) target = $region40
        $region39: #{noisy_linear_forward_prepared.1} parent=15 // pred_region
          %p309 = scmp.lt.s32.totalorder %s28, 1
          %s310 = scalar_select %p309, %s28, 1
          %s311 = scalar_lea.vmem %s5, %s310
        $region40: #{noisy_linear_forward_prepared.1} parent=15 // pred_fallthru
          _
      $region16: #{noisy_linear_forward_prepared.1} parent=5 // pred_fallthru
        _
      %p312 = scmp.le.s32.totalorder 1, %s21
      %p313 = scmp.lt.s32.totalorder %s21, 7
      %p314 = pnand %p312, %p313
      %p315 = pneg %p314
      // Predicated region
      $region41: #{noisy_linear_forward_prepared.1} parent=5 // pred_check
        _
      $region42: #{noisy_linear_forward_prepared.1} parent=5 // pred_check_branch
        %317 = sbr.rel (%p314) target = $region44
      $region43: #{noisy_linear_forward_prepared.1} parent=5 // pred_region
        %s318 = ssub.s32 %s21, 1
        %s319 = sand.u32 %s74, 1
        %s320 = scalar_lea.sflag [#allocation3], %s319
        %s321 = sand.u32 %s74, 1
        %s322 = smul.addr %s321, 128
        %s323 = scalar_lea.vmem [#allocation2], %s322
        // Predicated region
        $region45: #{noisy_linear_forward_prepared.1} parent=43 // pred_check
          %p324 = pneg %p87
        $region46: #{noisy_linear_forward_prepared.1} parent=43 // pred_check_branch
          %326 = sbr.rel (%p324) target = $region48
        $region47: #{noisy_linear_forward_prepared.1} parent=43 // pred_region
          %327 = dma.done %s320, 2048
        $region48: #{noisy_linear_forward_prepared.1} parent=43 // pred_fallthru
          _
        %s328 = sand.u32 %s102, 1
        %s329 = scalar_lea.sflag [#allocation6], %s328
        %s330 = sand.u32 %s102, 1
        %s331 = smul.addr %s330, 128
        %s332 = scalar_lea.vmem [#allocation5], %s331
        // Predicated region
        $region49: #{noisy_linear_forward_prepared.1} parent=43 // pred_check
          %p333 = pneg %p115
        $region50: #{noisy_linear_forward_prepared.1} parent=43 // pred_check_branch
          %335 = sbr.rel (%p333) target = $region52
        $region51: #{noisy_linear_forward_prepared.1} parent=43 // pred_region
          %336 = dma.done %s329, 2048
        $region52: #{noisy_linear_forward_prepared.1} parent=43 // pred_fallthru
          _
        %p337 = scmp.lt.s32.totalorder %s31, 2
        %s338 = scalar_select %p337, %s31, 2
        %s339 = smul.addr %s338, 8
        %s340 = scalar_lea.vmem %s0, %s339
        %p341 = pneg %p59
        %p342 = pneg %p56
        %s343 = sand.u32 %s74, 1
        %s344 = scalar_lea.sflag [#allocation3], %s343
        %s345 = sand.u32 %s74, 1
        %s346 = smul.addr %s345, 128
        %s347 = scalar_lea.vmem [#allocation2], %s346
        %p348 = pneg %p87
        %p349 = pneg %p84
        %s350 = sand.u32 %s102, 1
        %s351 = scalar_lea.sflag [#allocation6], %s350
        %s352 = sand.u32 %s102, 1
        %s353 = smul.addr %s352, 128
        %s354 = scalar_lea.vmem [#allocation5], %s353
        %p355 = pneg %p115
        %p356 = pneg %p112
        %s357 = smul.u32 16, %s31
        %p358 = scmp.lt.s32.totalorder %s357, 47
        %s359 = scalar_select %p358, %s357, 47
        %s360 = smul.addr %s359, 8
        %s361 = scalar_lea.vmem %s3, %s360
        %p362 = pneg %p141
        %p363 = pneg %p138
        %p364 = scmp.lt.s32.totalorder %s30, 1
        %s365 = scalar_select %p364, %s30, 1
        %s366 = scalar_lea.vmem %s4, %s365
        %p367 = pneg %p167
        %p368 = pneg %p164
        %p369 = scmp.lt.s32.totalorder %s30, 1
        %s370 = scalar_select %p369, %s30, 1
        %s371 = scalar_lea.vmem %s5, %s370
        %p372 = pneg %p193
        %p373 = pneg %p190
        %p374 = pneg %p219
        %p375 = pneg %p216
        %s376 = sand.u32 %s206, 1
        %s377 = scalar_lea.sflag [#allocation4], %s376
        %s378 = sand.u32 %s206, 1
        %s379 = smul.addr %s378, 8
        %s380 = scalar_lea.vmem [#allocation7], %s379
        %p381 = scmp.lt.s32.totalorder %s31, 2
        %s382 = scalar_select %p381, %s31, 2
        %s383 = smul.addr %s382, 8
        %s384 = scalar_lea.vmem %s0, %s383
        %s385 = smul.u32 16, %s31
        %s386 = smul.u32 16, %s31
        %s387 = smul.u32 16, %s31
        %p388 = scmp.lt.s32.totalorder %s387, 47
        %s389 = scalar_select %p388, %s387, 47
        %s390 = smul.addr %s389, 8
        %s391 = scalar_lea.vmem %s3, %s390
        %s392 = smul.u32 16, %s31
        %p393 = scmp.lt.s32.totalorder %s30, 1
        %s394 = scalar_select %p393, %s30, 1
        %s395 = scalar_lea.vmem %s4, %s394
        %p396 = scmp.lt.s32.totalorder %s30, 1
        %s397 = scalar_select %p396, %s30, 1
        %s398 = scalar_lea.vmem %s5, %s397
        %v399 = vld [vmem:[%s323] sm:$0xff]
        %v400 = vld [vmem:[%s323 + $0x8] sm:$0xff]
        %v401 = vld [vmem:[%s323 + $0x10] sm:$0xff]
        %v402 = vld [vmem:[%s323 + $0x18] sm:$0xff]
        %v403 = vld [vmem:[%s323 + $0x20] sm:$0xff]
        %v404 = vld [vmem:[%s323 + $0x28] sm:$0xff]
        %v405 = vld [vmem:[%s323 + $0x30] sm:$0xff]
        %v406 = vld [vmem:[%s323 + $0x38] sm:$0xff]
        %v407 = vld [vmem:[%s323 + $0x40] sm:$0xff]
        %v408 = vld [vmem:[%s323 + $0x48] sm:$0xff]
        %v409 = vld [vmem:[%s323 + $0x50] sm:$0xff]
        %v410 = vld [vmem:[%s323 + $0x58] sm:$0xff]
        %v411 = vld [vmem:[%s323 + $0x60] sm:$0xff]
        %v412 = vld [vmem:[%s323 + $0x68] sm:$0xff]
        %v413 = vld [vmem:[%s323 + $0x70] sm:$0xff]
        %v414 = vld [vmem:[%s323 + $0x78] sm:$0xff]
        %v415 = vld [vmem:[%s332] sm:$0xff]
        %v416 = vld [vmem:[%s332 + $0x8] sm:$0xff]
        %v417 = vld [vmem:[%s332 + $0x10] sm:$0xff]
        %v418 = vld [vmem:[%s332 + $0x18] sm:$0xff]
        %v419 = vld [vmem:[%s332 + $0x20] sm:$0xff]
        %v420 = vld [vmem:[%s332 + $0x28] sm:$0xff]
        %v421 = vld [vmem:[%s332 + $0x30] sm:$0xff]
        %v422 = vld [vmem:[%s332 + $0x38] sm:$0xff]
        %v423 = vld [vmem:[%s332 + $0x40] sm:$0xff]
        %v424 = vld [vmem:[%s332 + $0x48] sm:$0xff]
        %v425 = vld [vmem:[%s332 + $0x50] sm:$0xff]
        %v426 = vld [vmem:[%s332 + $0x58] sm:$0xff]
        %v427 = vld [vmem:[%s332 + $0x60] sm:$0xff]
        %v428 = vld [vmem:[%s332 + $0x68] sm:$0xff]
        %v429 = vld [vmem:[%s332 + $0x70] sm:$0xff]
        %v430 = vld [vmem:[%s332 + $0x78] sm:$0xff]
        %v431 = vld [vmem:[%s391] sm:$0xff]
        %v432 = vld [vmem:[%s391 + $0x8] sm:$0xff]
        %v433 = vld [vmem:[%s391 + $0x10] sm:$0xff]
        %v434 = vld [vmem:[%s391 + $0x18] sm:$0xff]
        %v435 = vld [vmem:[%s391 + $0x20] sm:$0xff]
        %v436 = vld [vmem:[%s391 + $0x28] sm:$0xff]
        %v437 = vld [vmem:[%s391 + $0x30] sm:$0xff]
        %v438 = vld [vmem:[%s391 + $0x38] sm:$0xff]
        %v439 = vld [vmem:[%s391 + $0x40] sm:$0xff]
        %v440 = vld [vmem:[%s391 + $0x48] sm:$0xff]
        %v441 = vld [vmem:[%s391 + $0x50] sm:$0xff]
        %v442 = vld [vmem:[%s391 + $0x58] sm:$0xff]
        %v443 = vld [vmem:[%s391 + $0x60] sm:$0xff]
        %v444 = vld [vmem:[%s391 + $0x68] sm:$0xff]
        %v445 = vld [vmem:[%s391 + $0x70] sm:$0xff]
        %v446 = vld [vmem:[%s391 + $0x78] sm:$0xff]
        %v447 = vld [vmem:[%s395] sm:$0x1]
        %449 = vset.pattern.permute.xlu0 0
        %450 = vperm.xlu0 %449, %v431
        %v451 = vpop.permute.xlu0 %450
        %454 = vset.pattern.permute.xlu0 0
        %455 = vperm.xlu0 %454, %v432
        %v456 = vpop.permute.xlu0 %455
        %459 = vset.pattern.permute.xlu0 0
        %460 = vperm.xlu0 %459, %v433
        %v461 = vpop.permute.xlu0 %460
        %464 = vset.pattern.permute.xlu0 0
        %465 = vperm.xlu0 %464, %v434
        %v466 = vpop.permute.xlu0 %465
        %469 = vset.pattern.permute.xlu0 0
        %470 = vperm.xlu0 %469, %v435
        %v471 = vpop.permute.xlu0 %470
        %474 = vset.pattern.permute.xlu0 0
        %475 = vperm.xlu0 %474, %v436
        %v476 = vpop.permute.xlu0 %475
        %479 = vset.pattern.permute.xlu0 0
        %480 = vperm.xlu0 %479, %v437
        %v481 = vpop.permute.xlu0 %480
        %484 = vset.pattern.permute.xlu0 0
        %485 = vperm.xlu0 %484, %v438
        %v486 = vpop.permute.xlu0 %485
        %489 = vset.pattern.permute.xlu0 0
        %490 = vperm.xlu0 %489, %v439
        %v491 = vpop.permute.xlu0 %490
        %494 = vset.pattern.permute.xlu0 0
        %495 = vperm.xlu0 %494, %v440
        %v496 = vpop.permute.xlu0 %495
        %499 = vset.pattern.permute.xlu0 0
        %500 = vperm.xlu0 %499, %v441
        %v501 = vpop.permute.xlu0 %500
        %504 = vset.pattern.permute.xlu0 0
        %505 = vperm.xlu0 %504, %v442
        %v506 = vpop.permute.xlu0 %505
        %509 = vset.pattern.permute.xlu0 0
        %510 = vperm.xlu0 %509, %v443
        %v511 = vpop.permute.xlu0 %510
        %514 = vset.pattern.permute.xlu0 0
        %515 = vperm.xlu0 %514, %v444
        %v516 = vpop.permute.xlu0 %515
        %519 = vset.pattern.permute.xlu0 0
        %520 = vperm.xlu0 %519, %v445
        %v521 = vpop.permute.xlu0 %520
        %524 = vset.pattern.permute.xlu0 0
        %525 = vperm.xlu0 %524, %v446
        %v526 = vpop.permute.xlu0 %525
        %v529 = vlaneseq
        %v530 = vshrl.u32 %v529, 7
        %v531 = vsub.s32 0, %v530
        %v532 = vrot.slane %v447, %v531
        %v534 = vmul.f32 %v451, %v532
        %v535 = vmul.f32 %v456, %v532
        %v536 = vmul.f32 %v461, %v532
        %v537 = vmul.f32 %v466, %v532
        %v538 = vmul.f32 %v471, %v532
        %v539 = vmul.f32 %v476, %v532
        %v540 = vmul.f32 %v481, %v532
        %v541 = vmul.f32 %v486, %v532
        %v542 = vmul.f32 %v491, %v532
        %v543 = vmul.f32 %v496, %v532
        %v544 = vmul.f32 %v501, %v532
        %v545 = vmul.f32 %v506, %v532
        %v546 = vmul.f32 %v511, %v532
        %v547 = vmul.f32 %v516, %v532
        %v548 = vmul.f32 %v521, %v532
        %v549 = vmul.f32 %v526, %v532
        %v550 = vmul.f32 %v415, %v534
        %v551 = vmul.f32 %v416, %v535
        %v552 = vmul.f32 %v417, %v536
        %v553 = vmul.f32 %v418, %v537
        %v554 = vmul.f32 %v419, %v538
        %v555 = vmul.f32 %v420, %v539
        %v556 = vmul.f32 %v421, %v540
        %v557 = vmul.f32 %v422, %v541
        %v558 = vmul.f32 %v423, %v542
        %v559 = vmul.f32 %v424, %v543
        %v560 = vmul.f32 %v425, %v544
        %v561 = vmul.f32 %v426, %v545
        %v562 = vmul.f32 %v427, %v546
        %v563 = vmul.f32 %v428, %v547
        %v564 = vmul.f32 %v429, %v548
        %v565 = vmul.f32 %v430, %v549
        %v566 = vadd.f32 %v399, %v550
        %v567 = vadd.f32 %v400, %v551
        %v568 = vadd.f32 %v401, %v552
        %v569 = vadd.f32 %v402, %v553
        %v570 = vadd.f32 %v403, %v554
        %v571 = vadd.f32 %v404, %v555
        %v572 = vadd.f32 %v405, %v556
        %v573 = vadd.f32 %v406, %v557
        %v574 = vadd.f32 %v407, %v558
        %v575 = vadd.f32 %v408, %v559
        %v576 = vadd.f32 %v409, %v560
        %v577 = vadd.f32 %v410, %v561
        %v578 = vadd.f32 %v411, %v562
        %v579 = vadd.f32 %v412, %v563
        %v580 = vadd.f32 %v413, %v564
        %v581 = vadd.f32 %v414, %v565
        %v582 = vld [vmem:[%s384] sm:$0xff]
        %583 = vmatprep.subr.mxu0 0.0
        %584 = vmatpush1.msra.mxu0 %v566
        %585 = vmatprep.subr.mxu0 0.0
        %586 = vmatpush1.msra.mxu0 %v567
        %587 = vmatprep.subr.mxu0 0.0
        %588 = vmatpush1.msra.mxu0 %v568
        %589 = vmatprep.subr.mxu0 0.0
        %590 = vmatpush1.msra.mxu0 %v569
        %591 = vmatprep.subr.mxu0 0.0
        %592 = vmatpush1.msra.mxu0 %v570
        %593 = vmatprep.subr.mxu0 0.0
        %594 = vmatpush1.msra.mxu0 %v571
        %595 = vmatprep.subr.mxu0 0.0
        %596 = vmatpush1.msra.mxu0 %v572
        %597 = vmatprep.subr.mxu0 0.0
        %598 = vmatpush1.msra.mxu0 %v573
        %599 = vmatprep.subr.mxu0 0.0
        %600 = vmatpush1.msra.mxu0 %v574
        %601 = vmatprep.subr.mxu0 0.0
        %602 = vmatpush1.msra.mxu0 %v575
        %603 = vmatprep.subr.mxu0 0.0
        %604 = vmatpush1.msra.mxu0 %v576
        %605 = vmatprep.subr.mxu0 0.0
        %606 = vmatpush1.msra.mxu0 %v577
        %607 = vmatprep.subr.mxu0 0.0
        %608 = vmatpush1.msra.mxu0 %v578
        %609 = vmatprep.subr.mxu0 0.0
        %610 = vmatpush1.msra.mxu0 %v579
        %611 = vmatprep.subr.mxu0 0.0
        %612 = vmatpush1.msra.mxu0 %v580
        %613 = vmatprep.subr.mxu0 0.0
        %614 = vmatpush1.msra.mxu0 %v581
        %615 = vmatprep.subr.mxu0 0.0
        %616 = vmatpush1.msra.mxu0 0.0
        %617 = vmatprep.subr.mxu0 0.0
        %618 = vmatpush1.msra.mxu0 0.0
        %619 = vmatprep.subr.mxu0 0.0
        %620 = vmatpush1.msra.mxu0 0.0
        %621 = vmatprep.subr.mxu0 0.0
        %622 = vmatpush1.msra.mxu0 0.0
        %623 = vmatprep.subr.mxu0 0.0
        %624 = vmatpush1.msra.mxu0 0.0
        %625 = vmatprep.subr.mxu0 0.0
        %626 = vmatpush1.msra.mxu0 0.0
        %627 = vmatprep.subr.mxu0 0.0
        %628 = vmatpush1.msra.mxu0 0.0
        %629 = vmatprep.subr.mxu0 0.0
        %630 = vmatpush1.msra.mxu0 0.0
        %631 = vmatprep.subr.mxu0 0.0
        %632 = vmatpush1.msra.mxu0 0.0
        %633 = vmatprep.subr.mxu0 0.0
        %634 = vmatpush1.msra.mxu0 0.0
        %635 = vmatprep.subr.mxu0 0.0
        %636 = vmatpush1.msra.mxu0 0.0
        %637 = vmatprep.subr.mxu0 0.0
        %638 = vmatpush1.msra.mxu0 0.0
        %639 = vmatprep.subr.mxu0 0.0
        %640 = vmatpush1.msra.mxu0 0.0
        %641 = vmatprep.subr.mxu0 0.0
        %642 = vmatpush1.msra.mxu0 0.0
        %643 = vmatprep.subr.mxu0 0.0
        %644 = vmatpush1.msra.mxu0 0.0
        %645 = vmatprep.subr.mxu0 0.0
        %646 = vmatpush1.msra.mxu0 0.0
        %647 = vmatprep.mubr.f32.mxu0 0.0
        %648 = vmatmul.mubr.f32.gmra.mrb[0].mxu0 %v582
        %v649 = vpop.f32.mrb[0].mxu0
        %v650 = vadd.f32 0.0, %v649
        %v651 = vpop.f32.mrb[0].mxu0
        %652 = vdwg.mxu0
        %p653 = scmp.eq.s32.totalorder %s31, 0
        // Predicated region
        $region53: #{noisy_linear_forward_prepared.1} parent=43 // pred_check
          %p654 = pneg %p653
        $region54: #{noisy_linear_forward_prepared.1} parent=43 // pred_check_branch
          %656 = sbr.rel (%p654) target = $region56
        $region55: #{noisy_linear_forward_prepared.1} parent=43 // pred_region
          %v657 = vld [vmem:[%s398] sm:$0x1]
          %v659 = vlaneseq
          %v660 = vshrl.u32 %v659, 7
          %v661 = vsub.s32 0, %v660
          %v662 = vrot.slane %v657, %v661
          %v664 = vadd.f32 %v650, %v662
          %665 = vst [vmem:[%s380] sm:$0xff] %v664
        $region56: #{noisy_linear_forward_prepared.1} parent=43 // pred_fallthru
          _
        %p666 = scmp.ne.s32.totalorder %s31, 0
        // Predicated region
        $region57: #{noisy_linear_forward_prepared.1} parent=43 // pred_check
          %p667 = pneg %p666
        $region58: #{noisy_linear_forward_prepared.1} parent=43 // pred_check_branch
          %669 = sbr.rel (%p667) target = $region60
        $region59: #{noisy_linear_forward_prepared.1} parent=43 // pred_region
          %v670 = vld [vmem:[%s380] sm:$0xff]
          %v671 = vadd.f32 %v670, %v650
          %672 = vst [vmem:[%s380] sm:$0xff] %v671
        $region60: #{noisy_linear_forward_prepared.1} parent=43 // pred_fallthru
          _
        %s673 = sand.u32 %s206, 1
        %s674 = scalar_lea.sflag [#allocation4], %s673
        %s675 = sand.u32 %s206, 1
        %s676 = smul.addr %s675, 8
        %s677 = scalar_lea.vmem [#allocation7], %s676
        // Predicated region
        $region61: #{noisy_linear_forward_prepared.1} parent=43 // pred_check
          %p678 = pneg %p216
        $region62: #{noisy_linear_forward_prepared.1} parent=43 // pred_check_branch
          %680 = sbr.rel (%p678) target = $region64
        $region63: #{noisy_linear_forward_prepared.1} parent=43 // pred_region
          %s682 = ssub.s32 128, 128
          %683 = vsyncadd %s674, %s682
          %s684 = smul.addr %s30, 128
          %s685 = scalar_lea.hbm %s6, %s684
          %s687 = sshll.u32 %s677, 4
          %s688 = int_to_ptr.vmem [resolvable:$true] %s687
          %690 = dma.vmem_to_hbm [thread:$0]  %s688, 128, %s685, %s674
        $region64: #{noisy_linear_forward_prepared.1} parent=43 // pred_fallthru
          _
      $region44: #{noisy_linear_forward_prepared.1} parent=5 // pred_fallthru
        _
      %p691 = scmp.le.s32.totalorder 2, %s21
      // Predicated region
      $region65: #{noisy_linear_forward_prepared.1} parent=5 // pred_check
        %p692 = pneg %p691
      $region66: #{noisy_linear_forward_prepared.1} parent=5 // pred_check_branch
        %694 = sbr.rel (%p692) target = $region68
      $region67: #{noisy_linear_forward_prepared.1} parent=5 // pred_region
        %s695 = ssub.s32 %s21, 2
        // Predicated region
        $region69: #{noisy_linear_forward_prepared.1} parent=67 // pred_check
          %p696 = pneg %p222
        $region70: #{noisy_linear_forward_prepared.1} parent=67 // pred_check_branch
          %698 = sbr.rel (%p696) target = $region72
        $region71: #{noisy_linear_forward_prepared.1} parent=67 // pred_region
          %s699 = sand.u32 %s207, 1
          %s700 = scalar_lea.sflag [#allocation4], %s699
          %s701 = sand.u32 %s207, 1
          %s702 = smul.addr %s701, 8
          %s703 = scalar_lea.vmem [#allocation7], %s702
          %704 = dma.done %s700, 128
        $region72: #{noisy_linear_forward_prepared.1} parent=67 // pred_fallthru
          _
      $region68: #{noisy_linear_forward_prepared.1} parent=5 // pred_fallthru
        _
    $region6: #{noisy_linear_forward_prepared.1} parent=1 // loop_footer
      %s25 = sadd.s32 1, %s21
    $region7: #{noisy_linear_forward_prepared.1} parent=1 // loop_footer_branch
      %20 = sbr.rel target = $region3
    $region8: #{noisy_linear_forward_prepared.1} parent=1 // loop_exit
      _
    %705 = vsyncpa [#allocation3], 1
    %s706 = scalar_lea.sflag [#allocation3], 1
    %707 = vsyncpa %s706, 1
    %708 = vsyncpa [#allocation6], 1
    %s709 = scalar_lea.sflag [#allocation6], 1
    %710 = vsyncpa %s709, 1
    %711 = vsyncpa [#allocation4], 1
    %s712 = scalar_lea.sflag [#allocation4], 1
    %713 = vsyncpa %s712, 1

</llo_original>
